<compile_context>
chip_gen: v5e
topology: v5e:2x2
jax: 0.10.0
libtpu: 0.0.40
codegen_flags: <defaults>
</compile_context>

<pallas_src>
import functools
import math

import jax
import jax.numpy as jnp
from jax.experimental import pallas as pl
from jax.experimental.pallas import tpu as pltpu

_LANE = 128            # lane width
_SUBLANE = 16          # bf16 sublane packing
_MAX_SINGLE_K = 2048   # largest contraction kept as a single VMEM-resident block
_PREF_TM = 256         # preferred row tile (MXU-friendly on v5e/v6e/v7x)
_PREF_TN = 512         # preferred col tile
_TK_SPLIT = 512        # K tile when the contraction has to be split


def _ceil_to(x, m):
    return ((x + m - 1) // m) * m


# ----------------------------- Pallas kernels --------------------------------
def _gemm_bias_kernel(a_ref, w_ref, b_ref, o_ref):
    """out = a @ w + bias; whole contraction lives in one block (no K axis)."""
    o_ref[...] = (
        jnp.dot(a_ref[...], w_ref[...], preferred_element_type=jnp.float32)
        + b_ref[...]
    ).astype(o_ref.dtype)


def _gemm_bias_ksplit_kernel(a_ref, w_ref, b_ref, o_ref, acc_ref):
    """out = a @ w + bias with a K grid axis; accumulator starts from the bias."""
    k = pl.program_id(2)

    @pl.when(k == 0)
    def _():
        acc_ref[...] = jnp.broadcast_to(b_ref[...], acc_ref.shape).astype(jnp.float32)

    acc_ref[...] += jnp.dot(a_ref[...], w_ref[...],
                            preferred_element_type=jnp.float32)

    @pl.when(k == pl.num_programs(2) - 1)
    def _():
        o_ref[...] = acc_ref[...].astype(o_ref.dtype)


def pallas_gemm_bias(a, w, bias, *, out_dtype=jnp.float32):
    """(R, K) @ (K, N) + bias(N,) -> (R, N).

    Inputs are cast to bf16 (native MXU rate); accumulation and output are f32.
    Padding to TPU tile multiples, tile selection and the single-K vs. split-K
    dispatch live here so callers never drop tail rows/cols.
    """
    R, K = a.shape
    K2, N = w.shape
    assert K2 == K and bias.shape == (N,)

    # --- tile selection: big tiles, but shrink to the problem when tiny ------
    r_pad = _ceil_to(R, _SUBLANE)
    tm = min(_PREF_TM, r_pad)
    r_pad = _ceil_to(r_pad, tm)

    n_pad = _ceil_to(N, _LANE)
    tn = min(_PREF_TN, n_pad)
    n_pad = _ceil_to(n_pad, tn)

    k_pad = _ceil_to(K, _LANE)
    if k_pad <= _MAX_SINGLE_K:
        tk = k_pad                        # single K block -> no accumulator
    else:
        tk = _TK_SPLIT
        k_pad = _ceil_to(k_pad, tk)

    a_p = jnp.pad(a, ((0, r_pad - R), (0, k_pad - K))).astype(jnp.bfloat16)
    w_p = jnp.pad(w, ((0, k_pad - K), (0, n_pad - N))).astype(jnp.bfloat16)
    b_p = jnp.pad(bias.astype(jnp.float32)[None, :], ((0, 0), (0, n_pad - N)))

    cost = pl.CostEstimate(
        flops=2 * r_pad * k_pad * n_pad,
        transcendentals=0,
        bytes_accessed=a_p.size * 2 + w_p.size * 2 + n_pad * 4 + r_pad * n_pad * 4,
    )

    if tk == k_pad:
        out_p = pl.pallas_call(
            _gemm_bias_kernel,
            out_shape=jax.ShapeDtypeStruct((r_pad, n_pad), out_dtype),
            grid_spec=pltpu.PrefetchScalarGridSpec(
                num_scalar_prefetch=0,
                grid=(r_pad // tm, n_pad // tn),
                in_specs=[
                    pl.BlockSpec((tm, k_pad), lambda i, j: (i, 0)),
                    pl.BlockSpec((k_pad, tn), lambda i, j: (0, j)),
                    pl.BlockSpec((1, tn), lambda i, j: (0, j)),
                ],
                out_specs=pl.BlockSpec((tm, tn), lambda i, j: (i, j)),
            ),
            compiler_params=pltpu.CompilerParams(
                dimension_semantics=("parallel", "parallel")),
            cost_estimate=cost,
        )(a_p, w_p, b_p)
    else:
        out_p = pl.pallas_call(
            _gemm_bias_ksplit_kernel,
            out_shape=jax.ShapeDtypeStruct((r_pad, n_pad), out_dtype),
            grid_spec=pltpu.PrefetchScalarGridSpec(
                num_scalar_prefetch=0,
                grid=(r_pad // tm, n_pad // tn, k_pad // tk),
                in_specs=[
                    pl.BlockSpec((tm, tk), lambda i, j, k: (i, k)),
                    pl.BlockSpec((tk, tn), lambda i, j, k: (k, j)),
                    pl.BlockSpec((1, tn), lambda i, j, k: (0, j)),
                ],
                out_specs=pl.BlockSpec((tm, tn), lambda i, j, k: (i, j)),
                scratch_shapes=[pltpu.VMEM((tm, tn), jnp.float32)],
            ),
            compiler_params=pltpu.CompilerParams(
                dimension_semantics=("parallel", "parallel", "arbitrary")),
            cost_estimate=cost,
        )(a_p, w_p, b_p)

    return out_p[:R, :N]


# ------------------------------- forward (JAX glue) ---------------------------
@functools.partial(jax.jit, static_argnames=("mel", "use_pallas"))
def merge_mels_forward(x, weight, bias, *, mel, use_pallas=None):
    """MergeMels forward, typology='channels'.

    x:      (B, C, M, S) float32
    weight: (hidden, S, mel, 1) float32   (PyTorch Conv2d OIHW layout)
    bias:   (hidden,) float32
    returns (B, C, H_out * hidden),  H_out = M - mel + 1
    """
    B, C, M, S = x.shape
    H = weight.shape[0]
    if mel > M:
        raise ValueError(f"mel ({mel}) must be <= number of mel bins ({M})")
    H_out = M - mel + 1

    # Conv weight (H, S, mel, 1) -> (mel*S, H); flat row index = k*S + s.
    w_mat = jnp.transpose(weight[:, :, :, 0], (2, 1, 0)).reshape(mel * S, H)

    if H_out == 1:
        # Kernel spans the full mel axis: no im2col, every x row read once.
        a_mat = x.reshape(B * C, M * S)
    else:
        # TODO(synk): fold the window offset into the A index_map (grid axis
        # over window position) instead of materializing the mel-fold im2col.
        idx = jnp.arange(H_out)[:, None] + jnp.arange(mel)[None, :]
        a_mat = x[:, :, idx, :].reshape(B * C * H_out, mel * S)

    rows, K = a_mat.shape
    if use_pallas is None:
        # Small-problem fast path: below a few MFLOP the fixed pallas_call /
        # per-grid-step overhead dwarfs the work; XLA's fused dot wins.
        use_pallas = (2 * rows * K * H) >= (1 << 22)

    if use_pallas:
        out = pallas_gemm_bias(a_mat, w_mat, bias)
    else:
        out = jnp.dot(a_mat, w_mat,
                      preferred_element_type=jnp.float32) + bias[None, :]

    # conv output (b, h, p, c) rearranged 'b s m c -> b c (m s)' == p*H + h.
    return out.reshape(B, C, H_out * H)


# ------------------------------- reference ------------------------------------
def merge_mels_reference(x, weight, bias, mel):
    """Pure-JAX f32 reference of the same conv + rearranges."""
    B, C, M, S = x.shape
    H = weight.shape[0]
    H_out = M - mel + 1
    idx = jnp.arange(H_out)[:, None] + jnp.arange(mel)[None, :]
    x_win = x[:, :, idx, :]                                   # (B, C, H_out, mel, S)
    out = jnp.einsum("bcpks,hsk->bcph", x_win, weight[..., 0],
                     precision=jax.lax.Precision.HIGHEST)
    out = out + bias[None, None, None, :]
    return out.reshape(B, C, H_out * H)


def _make_inputs(key, B, C, M, S, mel, hidden):
    kx, kw, kb = jax.random.split(key, 3)
    x = jax.random.normal(kx, (B, C, M, S), dtype=jnp.float32)
    fan_in = S * mel * 1
    bound = 1.0 / math.sqrt(fan_in)
    weight = jax.random.uniform(kw, (hidden, S, mel, 1), jnp.float32, -bound, bound)
    bias = jax.random.uniform(kb, (hidden,), jnp.float32, -bound, bound)
    return x, weight, bias


# --------------------------------- main ---------------------------------------
if __name__ == "__main__":
    key = jax.random.PRNGKey(0)
    k1, k2, k3 = jax.random.split(key, 3)

    # 1) Module-consistent demo shapes (M == mel_spectrogram -> H_out == 1).
    #    Forces the Pallas path: single-K-block kernel, no im2col.
    B, C, M, S, mel, hidden = 2, 4, 16, 16, 16, 32
    x, w, b = _make_inputs(k1, B, C, M, S, mel, hidden)
    out = jax.block_until_ready(merge_mels_forward(x, w, b, mel=mel, use_pallas=True))
    ref = merge_mels_reference(x, w, b, mel)
    assert out.shape == (B, C, (M - mel + 1) * hidden), out.shape
    assert jnp.allclose(out, ref, atol=3e-2, rtol=3e-2), \
        float(jnp.max(jnp.abs(out - ref)))

    # 2) Large contraction (K = mel*S > 2048): exercises the split-K kernel
    #    (bias-initialized accumulator, 'arbitrary' K axis).
    x, w, b = _make_inputs(k2, 2, 4, 16, 144, 16, 32)
    out = jax.block_until_ready(merge_mels_forward(x, w, b, mel=16, use_pallas=True))
    ref = merge_mels_reference(x, w, b, 16)
    assert jnp.allclose(out, ref, atol=3e-2, rtol=3e-2), \
        float(jnp.max(jnp.abs(out - ref)))

    # 3) mel kernel smaller than the mel axis (H_out > 1) fallback path.
    x, w, b = _make_inputs(k3, 2, 4, 16, 16, 8, 32)
    out = jax.block_until_ready(merge_mels_forward(x, w, b, mel=8, use_pallas=True))
    ref = merge_mels_reference(x, w, b, 8)
    assert out.shape == (2, 4, (16 - 8 + 1) * 32), out.shape
    assert jnp.allclose(out, ref, atol=3e-2, rtol=3e-2), \
        float(jnp.max(jnp.abs(out - ref)))

    print("KERNEL_OK")
</pallas_src>

<mosaic_0001>
module attributes {stable_mosaic.version = 11 : i64} {
  func.func @_gemm_bias_kernel(%arg0: i32, %arg1: i32, %arg2: memref<16x256xbf16, #tpu.memory_space<vmem>>, %arg3: memref<256x128xbf16, #tpu.memory_space<vmem>>, %arg4: memref<1x128xf32, #tpu.memory_space<vmem>>, %arg5: memref<16x128xf32, #tpu.memory_space<vmem>>) attributes {dimension_semantics = [#tpu.dimension_semantics<parallel>, #tpu.dimension_semantics<parallel>], iteration_bounds = array<i64: 1, 1>, scalar_prefetch = 0 : i64, scratch_operands = 0 : i64, tpu.core_type = #tpu.core_type<tc>, window_params = [{transform_indices = @transform_0, window_bounds = array<i64: 16, 256>}, {transform_indices = @transform_1, window_bounds = array<i64: 256, 128>}, {transform_indices = @transform_2, window_bounds = array<i64: 1, 128>}, {transform_indices = @transform_3, window_bounds = array<i64: 16, 128>}]} {
    %c0 = arith.constant 0 : index
    %c0_0 = arith.constant 0 : index
    %0 = vector.load %arg2[%c0, %c0_0] : memref<16x256xbf16, #tpu.memory_space<vmem>>, vector<16x256xbf16>
    %c0_1 = arith.constant 0 : index
    %c0_2 = arith.constant 0 : index
    %1 = vector.load %arg3[%c0_1, %c0_2] : memref<256x128xbf16, #tpu.memory_space<vmem>>, vector<256x128xbf16>
    %cst = arith.constant dense<0.000000e+00> : vector<16x128xf32>
    %2 = tpu.matmul %0, %1, %cst {dimension_numbers = #tpu.dot_dimension_numbers<[1], [0], [0], [1], [0, 0, 1, 1], [], []>} : vector<16x256xbf16>, vector<256x128xbf16>, vector<16x128xf32> -> vector<16x128xf32>
    %c0_3 = arith.constant 0 : index
    %c0_4 = arith.constant 0 : index
    %3 = vector.load %arg4[%c0_3, %c0_4] : memref<1x128xf32, #tpu.memory_space<vmem>>, vector<1x128xf32>
    %4 = vector.broadcast %3 : vector<1x128xf32> to vector<16x128xf32>
    %5 = arith.addf %2, %4 : vector<16x128xf32>
    %c0_5 = arith.constant 0 : index
    %c0_6 = arith.constant 0 : index
    %6 = vector.load %arg5[%c0_5, %c0_6] : memref<16x128xf32, #tpu.memory_space<vmem>>, vector<16x128xf32>
    tpu.vector_store %arg5[%c0_5, %c0_6], %5 {strides = array<i32>} : memref<16x128xf32, #tpu.memory_space<vmem>>, vector<16x128xf32>,
    return
  }
  func.func @transform_0(%arg0: i32, %arg1: i32) -> (i32, i32) {
    %c0_i32 = arith.constant 0 : i32
    %c0_i32_0 = arith.constant 0 : i32
    return %arg0, %c0_i32 : i32, i32
  }
  func.func @transform_1(%arg0: i32, %arg1: i32) -> (i32, i32) {
    %c0_i32 = arith.constant 0 : i32
    %c0_i32_0 = arith.constant 0 : i32
    return %c0_i32, %arg1 : i32, i32
  }
  func.func @transform_2(%arg0: i32, %arg1: i32) -> (i32, i32) {
    %c0_i32 = arith.constant 0 : i32
    %c0_i32_0 = arith.constant 0 : i32
    return %c0_i32, %arg1 : i32, i32
  }
  func.func @transform_3(%arg0: i32, %arg1: i32) -> (i32, i32) {
    %c0_i32 = arith.constant 0 : i32
    return %arg0, %arg1 : i32, i32
  }
}

</mosaic_0001>

<llo_original>
// kernel: merge_mels_forward.1
$region0: #{merge_mels_forward.1}
  #allocation0 [shape = 'u32[]', space=smem, size = 0x4, offset = 0x4, fixed_abs, tag = 'smem constant byte address 0x4 - core index']
  #allocation1 [shape = 'u32[72,128]{1,0:T(1,128)}', space=vmem, size = 0x9000, scoped, tag = 'internal scratch']
  %s0 = inlined_call_operand.vmem [shape: bf16[16,256], index: 0, kind: input, shape index: {}]
  %s1 = inlined_call_operand.vmem [shape: bf16[256,128], index: 1, kind: input, shape index: {}]
  %s2 = inlined_call_operand.vmem [shape: f32[1,128], index: 2, kind: input, shape index: {}]
  %s3 = inlined_call_operand.vmem [shape: f32[16,128], index: 3, kind: output, shape index: {}]
  %s4 = sld [smem:[#allocation0]]
  $region22: #{merge_mels_forward.1} parent=0
    _
  %s6 = ssub.s32 1, %s4
  %s7 = scalar_select 0, %s6, %s4
  // Predicated region
  $region2: #{merge_mels_forward.1} parent=0 // pred_check
    _
  $region3: #{merge_mels_forward.1} parent=0 // pred_check_branch
    %9 = sbr.rel (0) target = $region5
  $region4: #{merge_mels_forward.1} parent=0 // pred_region
    _
  $region5: #{merge_mels_forward.1} parent=0 // pred_fallthru
    _
  // Predicated region
  $region6: #{merge_mels_forward.1} parent=0 // pred_check
    _
  $region7: #{merge_mels_forward.1} parent=0 // pred_check_branch
    %11 = sbr.rel (0) target = $region9
  $region8: #{merge_mels_forward.1} parent=0 // pred_region
    _
  $region9: #{merge_mels_forward.1} parent=0 // pred_fallthru
    _
  // Predicated region
  $region10: #{merge_mels_forward.1} parent=0 // pred_check
    _
  $region11: #{merge_mels_forward.1} parent=0 // pred_check_branch
    %13 = sbr.rel (0) target = $region13
  $region12: #{merge_mels_forward.1} parent=0 // pred_region
    _
  $region13: #{merge_mels_forward.1} parent=0 // pred_fallthru
    _
  %v14 = vld [vmem:[%s0] sm:$0xff]
  %v15 = vld [vmem:[%s0 + $0x8] sm:$0xff]
  %v16 = vld [vmem:[%s1] sm:$0xf]
  %v17 = vld [vmem:[%s1 + $0x4] sm:$0xf]
  %v18 = vld [vmem:[%s1 + $0x8] sm:$0xf]
  %v19 = vld [vmem:[%s1 + $0xc] sm:$0xf]
  %v20 = vld [vmem:[%s1 + $0x10] sm:$0xf]
  %v21 = vld [vmem:[%s1 + $0x14] sm:$0xf]
  %v22 = vld [vmem:[%s1 + $0x18] sm:$0xf]
  %v23 = vld [vmem:[%s1 + $0x1c] sm:$0xf]
  %v24 = vld [vmem:[%s1 + $0x20] sm:$0xf]
  %v25 = vld [vmem:[%s1 + $0x24] sm:$0xf]
  %v26 = vld [vmem:[%s1 + $0x28] sm:$0xf]
  %v27 = vld [vmem:[%s1 + $0x2c] sm:$0xf]
  %v28 = vld [vmem:[%s1 + $0x30] sm:$0xf]
  %v29 = vld [vmem:[%s1 + $0x34] sm:$0xf]
  %v30 = vld [vmem:[%s1 + $0x38] sm:$0xf]
  %v31 = vld [vmem:[%s1 + $0x3c] sm:$0xf]
  %v32 = vld [vmem:[%s1 + $0x40] sm:$0xf]
  %v33 = vld [vmem:[%s1 + $0x44] sm:$0xf]
  %v34 = vld [vmem:[%s1 + $0x48] sm:$0xf]
  %v35 = vld [vmem:[%s1 + $0x4c] sm:$0xf]
  %v36 = vld [vmem:[%s1 + $0x50] sm:$0xf]
  %v37 = vld [vmem:[%s1 + $0x54] sm:$0xf]
  %v38 = vld [vmem:[%s1 + $0x58] sm:$0xf]
  %v39 = vld [vmem:[%s1 + $0x5c] sm:$0xf]
  %v40 = vld [vmem:[%s1 + $0x60] sm:$0xf]
  %v41 = vld [vmem:[%s1 + $0x64] sm:$0xf]
  %v42 = vld [vmem:[%s1 + $0x68] sm:$0xf]
  %v43 = vld [vmem:[%s1 + $0x6c] sm:$0xf]
  %v44 = vld [vmem:[%s1 + $0x70] sm:$0xf]
  %v45 = vld [vmem:[%s1 + $0x74] sm:$0xf]
  %v46 = vld [vmem:[%s1 + $0x78] sm:$0xf]
  %v47 = vld [vmem:[%s1 + $0x7c] sm:$0xf]
  %v48 = vld [vmem:[%s2] sm:$0x1]
  %v50 = vperm.slane %v48, 0
  %v54 = vunpack.c.l.b16 %v14
  %v55 = vunpack.c.h.b16 %v14
  %v56 = vunpack.c.l.b16 %v15
  %v57 = vunpack.c.h.b16 %v15
  %v58 = vpack.c.b16 %v56, %v54
  %v59 = vpack.c.b16 %v57, %v55
  %v94 = vunpack.c.l.b16 %v16
  %v95 = vunpack.c.l.b16 %v17
  %v96 = vunpack.c.l.b16 %v18
  %v97 = vunpack.c.l.b16 %v19
  %v98 = vunpack.c.l.b16 %v20
  %v99 = vunpack.c.l.b16 %v21
  %v100 = vunpack.c.l.b16 %v22
  %v101 = vunpack.c.l.b16 %v23
  %v102 = vunpack.c.l.b16 %v24
  %v103 = vunpack.c.l.b16 %v25
  %v104 = vunpack.c.l.b16 %v26
  %v105 = vunpack.c.l.b16 %v27
  %v106 = vunpack.c.l.b16 %v28
  %v107 = vunpack.c.l.b16 %v29
  %v108 = vunpack.c.l.b16 %v30
  %v109 = vunpack.c.l.b16 %v31
  %v110 = vunpack.c.l.b16 %v32
  %v111 = vunpack.c.l.b16 %v33
  %v112 = vunpack.c.l.b16 %v34
  %v113 = vunpack.c.l.b16 %v35
  %v114 = vunpack.c.l.b16 %v36
  %v115 = vunpack.c.l.b16 %v37
  %v116 = vunpack.c.l.b16 %v38
  %v117 = vunpack.c.l.b16 %v39
  %v118 = vunpack.c.l.b16 %v40
  %v119 = vunpack.c.l.b16 %v41
  %v120 = vunpack.c.l.b16 %v42
  %v121 = vunpack.c.l.b16 %v43
  %v122 = vunpack.c.l.b16 %v44
  %v123 = vunpack.c.l.b16 %v45
  %v124 = vunpack.c.l.b16 %v46
  %v125 = vunpack.c.l.b16 %v47
  %v126 = vpack.c.b16 %v95, %v94
  %v127 = vpack.c.b16 %v97, %v96
  %v128 = vpack.c.b16 %v99, %v98
  %v129 = vpack.c.b16 %v101, %v100
  %v130 = vpack.c.b16 %v103, %v102
  %v131 = vpack.c.b16 %v105, %v104
  %v132 = vpack.c.b16 %v107, %v106
  %v133 = vpack.c.b16 %v109, %v108
  %v134 = vpack.c.b16 %v111, %v110
  %v135 = vpack.c.b16 %v113, %v112
  %v136 = vpack.c.b16 %v115, %v114
  %v137 = vpack.c.b16 %v117, %v116
  %v138 = vpack.c.b16 %v119, %v118
  %v139 = vpack.c.b16 %v121, %v120
  %v140 = vpack.c.b16 %v123, %v122
  %v141 = vpack.c.b16 %v125, %v124
  %158 = vmatpush.bf16.msra.mxu0 %v133
  %159 = vmatpush.bf16.msra.mxu0 %v132
  %160 = vmatpush.bf16.msra.mxu0 %v131
  %161 = vmatpush.bf16.msra.mxu0 %v130
  %162 = vmatpush.bf16.msra.mxu0 %v129
  %163 = vmatpush.bf16.msra.mxu0 %v128
  %164 = vmatpush.bf16.msra.mxu0 %v127
  %165 = vmatpush.bf16.msra.mxu0 %v126
  %166 = vmatmul.bf16.gmra.mxu0 %v58
  %v167 = vpop.f32.mrf.mxu0
  %v168 = vadd.f32 %v50, %v167
  %v169 = vpop.f32.mrf.mxu0
  %v170 = vadd.f32 %v50, %v169
  %171 = vdwg.mxu0
  %172 = vmatpush.bf16.msra.mxu0 %v141
  %173 = vmatpush.bf16.msra.mxu0 %v140
  %174 = vmatpush.bf16.msra.mxu0 %v139
  %175 = vmatpush.bf16.msra.mxu0 %v138
  %176 = vmatpush.bf16.msra.mxu0 %v137
  %177 = vmatpush.bf16.msra.mxu0 %v136
  %178 = vmatpush.bf16.msra.mxu0 %v135
  %179 = vmatpush.bf16.msra.mxu0 %v134
  %180 = vmatmul.bf16.gmra.mxu0 %v59
  %v181 = vpop.f32.mrf.mxu0
  %v182 = vadd.f32 %v168, %v181
  %v183 = vpop.f32.mrf.mxu0
  %v184 = vadd.f32 %v170, %v183
  %185 = vdwg.mxu0
  %186 = vst [vmem:[%s3] sm:$0xff] %v182
  %187 = vst [vmem:[%s3 + $0x8] sm:$0xff] %v184
  // Predicated region
  $region14: #{merge_mels_forward.1} parent=0 // pred_check
    _
  $region15: #{merge_mels_forward.1} parent=0 // pred_check_branch
    %189 = sbr.rel (0) target = $region17
  $region16: #{merge_mels_forward.1} parent=0 // pred_region
    _
  $region17: #{merge_mels_forward.1} parent=0 // pred_fallthru
    _
  // Predicated region
  $region18: #{merge_mels_forward.1} parent=0 // pred_check
    _
  $region19: #{merge_mels_forward.1} parent=0 // pred_check_branch
    %191 = sbr.rel (0) target = $region21
  $region20: #{merge_mels_forward.1} parent=0 // pred_region
    _
  $region21: #{merge_mels_forward.1} parent=0 // pred_fallthru
    _

</llo_original>
